<compile_context>
chip_gen: v7x
topology: tpu7x:2x2x1
jax: 0.10.0
libtpu: 0.0.40
codegen_flags: <defaults>
</compile_context>

<pallas_src>
import math
import functools

import jax
import jax.numpy as jnp
from jax.experimental import pallas as pl
from jax.experimental.pallas import tpu as pltpu


# ----------------------------- kernel 1 -------------------------------------
def _cumsum_norm_kernel(nm_ref, tri_h_ref, tri_w_ref, y_ref, x_ref, *, eps, scale):
    nm = nm_ref[0]                                       # (H, W) 0/1 floats
    # cumsum over H: lower-triangular (incl. diag) @ nm ; over W: nm @ upper-tri
    y_embed = jnp.dot(tri_h_ref[...], nm, preferred_element_type=jnp.float32)  # (H, W)
    x_embed = jnp.dot(nm, tri_w_ref[...], preferred_element_type=jnp.float32)  # (H, W)
    H, W = nm.shape
    y_ref[0] = y_embed / (y_embed[H - 1:H, :] + eps) * scale                    # (H, W)
    x_ref[0] = x_embed / (x_embed[:, W - 1:W] + eps) * scale                    # (H, W)


# ----------------------------- kernel 2 -------------------------------------
def _sine_embed_kernel(y_ref, x_ref, inv_ty_ref, inv_tx_ref, phase_ref, out_ref, *, C):
    y = y_ref[0]                # (1, TS)  normalized y coordinate (already * 2*pi)
    x = x_ref[0]                # (1, TS)
    ph = phase_ref[...]         # (C, 1)   0 for even channels, pi/2 for odd (cos via sin)
    # (C,1) * (1,TS) + (C,1): lane-broadcast of the column, sublane-broadcast of
    # the row -> (C, TS).  Single sin per element; stores are two lane-dense slabs.
    out_ref[0, :C, :] = jnp.sin(inv_ty_ref[...] * y + ph).astype(out_ref.dtype)
    out_ref[0, C:, :] = jnp.sin(inv_tx_ref[...] * x + ph).astype(out_ref.dtype)


# ----------------------------- wrapper --------------------------------------
def _pick_spatial_tile(hw, max_tile=2048):
    """Largest spatial tile that is a multiple of 128 and divides H*W (or H*W itself)."""
    if hw <= max_tile:
        return hw
    for ts in range(max_tile - (max_tile % 128), 0, -128):
        if hw % ts == 0:
            return ts
    return hw  # no lane-aligned divisor; fall back to one tile per image


def dino_position_embedding(masks, *, inplanes=128, temperature_h=10000,
                            temperature_w=10000, eps=1e-6, out_dtype=jnp.float32):
    """masks: (B, H, W) bool (True = padded). Returns (B, 2*inplanes, H, W)."""
    assert inplanes % 2 == 0, "inplanes must be even (sin/cos channel pairs)"
    B, H, W = masks.shape
    C = inplanes
    HW = H * W
    scale = 2.0 * math.pi

    nm = (~masks).astype(jnp.float32)                                  # (B, H, W)

    # Triangular cumsum matrices, built once (not per grid step).
    rh = jnp.arange(H)
    tri_h = (rh[None, :] <= rh[:, None]).astype(jnp.float32)           # (H, H)
    rw = jnp.arange(W)
    tri_w = (rw[:, None] <= rw[None, :]).astype(jnp.float32)           # (W, W)

    y_norm, x_norm = pl.pallas_call(
        functools.partial(_cumsum_norm_kernel, eps=eps, scale=scale),
        out_shape=(jax.ShapeDtypeStruct((B, H, W), jnp.float32),
                   jax.ShapeDtypeStruct((B, H, W), jnp.float32)),
        grid_spec=pltpu.PrefetchScalarGridSpec(
            num_scalar_prefetch=0,
            grid=(B,),
            in_specs=[
                pl.BlockSpec((1, H, W), lambda b: (b, 0, 0)),
                pl.BlockSpec((H, H), lambda b: (0, 0)),
                pl.BlockSpec((W, W), lambda b: (0, 0)),
            ],
            out_specs=[
                pl.BlockSpec((1, H, W), lambda b: (b, 0, 0)),
                pl.BlockSpec((1, H, W), lambda b: (b, 0, 0)),
            ]),
        compiler_params=pltpu.CompilerParams(dimension_semantics=("parallel",)),
    )(nm, tri_h, tri_w)

    # Free reshapes: collapse spatial dims onto the lane axis.
    y_flat = y_norm.reshape(B, 1, HW)
    x_flat = x_norm.reshape(B, 1, HW)

    # Frequency / phase tables as (C, 1) columns (channel on sublanes).
    d = jnp.arange(C, dtype=jnp.float32)
    expo = 2.0 * jnp.floor(d / 2.0) / C
    inv_ty = (1.0 / (temperature_h ** expo)).reshape(C, 1)
    inv_tx = (1.0 / (temperature_w ** expo)).reshape(C, 1)
    phase = ((d % 2.0) * (math.pi / 2.0)).reshape(C, 1)    # cos(x) == sin(x + pi/2)

    ts = _pick_spatial_tile(HW)
    n_s = HW // ts
    out_block_bytes = 2 * C * ts * jnp.dtype(out_dtype).itemsize
    vmem_limit = int(min(100 * 2**20,
                         max(32 * 2**20,
                             3 * (out_block_bytes + 2 * ts * 4) + (2 << 20))))

    # NOTE: out_dtype=jnp.bfloat16 halves HBM writeback on v6e/v7x if the
    # consumer tolerates it; f32 kept by default to match the reference exactly.
    out_flat = pl.pallas_call(
        functools.partial(_sine_embed_kernel, C=C),
        out_shape=jax.ShapeDtypeStruct((B, 2 * C, HW), out_dtype),
        grid_spec=pltpu.PrefetchScalarGridSpec(
            num_scalar_prefetch=0,
            grid=(B, n_s),
            in_specs=[
                pl.BlockSpec((1, 1, ts), lambda b, s: (b, 0, s)),
                pl.BlockSpec((1, 1, ts), lambda b, s: (b, 0, s)),
                pl.BlockSpec((C, 1), lambda b, s: (0, 0)),
                pl.BlockSpec((C, 1), lambda b, s: (0, 0)),
                pl.BlockSpec((C, 1), lambda b, s: (0, 0)),
            ],
            out_specs=pl.BlockSpec((1, 2 * C, ts), lambda b, s: (b, 0, s)),
        ),
        compiler_params=pltpu.CompilerParams(
            dimension_semantics=("parallel", "parallel"),
            vmem_limit_bytes=vmem_limit),
    )(y_flat, x_flat, inv_ty, inv_tx, phase)

    # Free reshape: split H*W back into (H, W).  No transpose, no extra HBM pass.
    return out_flat.reshape(B, 2 * C, H, W)


# ----------------------------- reference ------------------------------------
def _reference(masks, *, inplanes, temperature_h, temperature_w, eps):
    """Pure-JAX transcription of the PyTorch forward (for verification)."""
    scale = 2.0 * math.pi
    nm = (~masks).astype(jnp.float32)
    y_embed = jnp.cumsum(nm, axis=1)
    x_embed = jnp.cumsum(nm, axis=2)
    y_embed = y_embed / (y_embed[:, -1:, :] + eps) * scale
    x_embed = x_embed / (x_embed[:, :, -1:] + eps) * scale
    d = jnp.arange(inplanes, dtype=jnp.float32)
    dim_tx = temperature_w ** (2.0 * jnp.floor(d / 2.0) / inplanes)
    dim_ty = temperature_h ** (2.0 * jnp.floor(d / 2.0) / inplanes)
    pos_x = x_embed[:, :, :, None] / dim_tx
    pos_y = y_embed[:, :, :, None] / dim_ty
    B, H, W, _ = pos_x.shape
    pos_x = jnp.stack([jnp.sin(pos_x[..., 0::2]), jnp.cos(pos_x[..., 1::2])],
                      axis=4).reshape(B, H, W, -1)
    pos_y = jnp.stack([jnp.sin(pos_y[..., 0::2]), jnp.cos(pos_y[..., 1::2])],
                      axis=4).reshape(B, H, W, -1)
    return jnp.concatenate([pos_y, pos_x], axis=3).transpose(0, 3, 1, 2)


if __name__ == "__main__":
    B, H, W = 2, 16, 16
    INPLANES = 32  # small hidden size; output channels = 2 * INPLANES = 64

    # deterministic DETR-style padding masks: True outside a per-image valid box
    key = jax.random.PRNGKey(0)
    kh, kw = jax.random.split(key)
    valid_h = jax.random.randint(kh, (B,), H // 2, H + 1)
    valid_w = jax.random.randint(kw, (B,), W // 2, W + 1)
    rows = jnp.arange(H)[None, :, None]
    cols = jnp.arange(W)[None, None, :]
    masks = (rows >= valid_h[:, None, None]) | (cols >= valid_w[:, None, None])

    out = dino_position_embedding(masks, inplanes=INPLANES,
                                  temperature_h=10000, temperature_w=10000,
                                  eps=1e-6)
    out = jax.block_until_ready(out)

    ref = _reference(masks, inplanes=INPLANES, temperature_h=10000,
                     temperature_w=10000, eps=1e-6)

    assert out.shape == (B, 2 * INPLANES, H, W), out.shape
    assert jnp.allclose(out, ref, rtol=1e-4, atol=1e-4), float(
        jnp.max(jnp.abs(out - ref)))
    print("KERNEL_OK")
</pallas_src>

<mosaic_0001>
module attributes {stable_mosaic.version = 11 : i64} {
  func.func @_cumsum_norm_kernel(%arg0: i32, %arg1: memref<1x16x16xf32, #tpu.memory_space<vmem>>, %arg2: memref<16x16xf32, #tpu.memory_space<vmem>>, %arg3: memref<16x16xf32, #tpu.memory_space<vmem>>, %arg4: memref<1x16x16xf32, #tpu.memory_space<vmem>>, %arg5: memref<1x16x16xf32, #tpu.memory_space<vmem>>) attributes {dimension_semantics = [#tpu.dimension_semantics<parallel>], iteration_bounds = array<i64: 2>, scalar_prefetch = 0 : i64, scratch_operands = 0 : i64, tpu.core_type = #tpu.core_type<tc>, window_params = [{transform_indices = @transform_0, window_bounds = array<i64: 1, 16, 16>}, {pipeline_mode = #tpu.pipeline_mode<synchronous>, transform_indices = @transform_1, window_bounds = array<i64: 16, 16>}, {pipeline_mode = #tpu.pipeline_mode<synchronous>, transform_indices = @transform_2, window_bounds = array<i64: 16, 16>}, {transform_indices = @transform_3, window_bounds = array<i64: 1, 16, 16>}, {transform_indices = @transform_4, window_bounds = array<i64: 1, 16, 16>}]} {
    %c0 = arith.constant 0 : index
    %c0_0 = arith.constant 0 : index
    %c0_1 = arith.constant 0 : index
    %0 = vector.load %arg1[%c0, %c0_0, %c0_1] : memref<1x16x16xf32, #tpu.memory_space<vmem>>, vector<1x16x16xf32>
    %1 = vector.shape_cast %0 : vector<1x16x16xf32> to vector<16x16xf32>
    %c0_2 = arith.constant 0 : index
    %c0_3 = arith.constant 0 : index
    %2 = vector.load %arg2[%c0_2, %c0_3] : memref<16x16xf32, #tpu.memory_space<vmem>>, vector<16x16xf32>
    %cst = arith.constant dense<0.000000e+00> : vector<16x16xf32>
    %3 = tpu.matmul %2, %1, %cst {dimension_numbers = #tpu.dot_dimension_numbers<[1], [0], [0], [1], [0, 0, 1, 1], [], []>} : vector<16x16xf32>, vector<16x16xf32>, vector<16x16xf32> -> vector<16x16xf32>
    %c0_4 = arith.constant 0 : index
    %c0_5 = arith.constant 0 : index
    %4 = vector.load %arg3[%c0_4, %c0_5] : memref<16x16xf32, #tpu.memory_space<vmem>>, vector<16x16xf32>
    %cst_6 = arith.constant dense<0.000000e+00> : vector<16x16xf32>
    %5 = tpu.matmul %1, %4, %cst_6 {dimension_numbers = #tpu.dot_dimension_numbers<[1], [0], [0], [1], [0, 0, 1, 1], [], []>} : vector<16x16xf32>, vector<16x16xf32>, vector<16x16xf32> -> vector<16x16xf32>
    %6 = vector.extract_strided_slice %3 {offsets = [15, 0], sizes = [1, 16], strides = [1, 1]} : vector<16x16xf32> to vector<1x16xf32>
    %cst_7 = arith.constant 9.99999997E-7 : f32
    %7 = vector.broadcast %cst_7 : f32 to vector<1x16xf32>
    %8 = arith.addf %6, %7 : vector<1x16xf32>
    %9 = vector.broadcast %8 : vector<1x16xf32> to vector<16x16xf32>
    %10 = arith.divf %3, %9 : vector<16x16xf32>
    %cst_8 = arith.constant 6.28318548 : f32
    %11 = vector.broadcast %cst_8 : f32 to vector<16x16xf32>
    %12 = arith.mulf %10, %11 : vector<16x16xf32>
    %c0_9 = arith.constant 0 : index
    %c0_10 = arith.constant 0 : index
    %c0_11 = arith.constant 0 : index
    %13 = vector.load %arg4[%c0_9, %c0_10, %c0_11] : memref<1x16x16xf32, #tpu.memory_space<vmem>>, vector<1x16x16xf32>
    %14 = vector.shape_cast %13 : vector<1x16x16xf32> to vector<16x16xf32>
    %15 = vector.shape_cast %12 : vector<16x16xf32> to vector<1x16x16xf32>
    tpu.vector_store %arg4[%c0_9, %c0_10, %c0_11], %15 {strides = array<i32>} : memref<1x16x16xf32, #tpu.memory_space<vmem>>, vector<1x16x16xf32>,
    %16 = vector.extract_strided_slice %5 {offsets = [0, 15], sizes = [16, 1], strides = [1, 1]} : vector<16x16xf32> to vector<16x1xf32>
    %cst_12 = arith.constant 9.99999997E-7 : f32
    %17 = vector.broadcast %cst_12 : f32 to vector<16x1xf32>
    %18 = arith.addf %16, %17 : vector<16x1xf32>
    %19 = vector.broadcast %18 : vector<16x1xf32> to vector<16x16xf32>
    %20 = arith.divf %5, %19 : vector<16x16xf32>
    %cst_13 = arith.constant 6.28318548 : f32
    %21 = vector.broadcast %cst_13 : f32 to vector<16x16xf32>
    %22 = arith.mulf %20, %21 : vector<16x16xf32>
    %c0_14 = arith.constant 0 : index
    %c0_15 = arith.constant 0 : index
    %c0_16 = arith.constant 0 : index
    %23 = vector.load %arg5[%c0_14, %c0_15, %c0_16] : memref<1x16x16xf32, #tpu.memory_space<vmem>>, vector<1x16x16xf32>
    %24 = vector.shape_cast %23 : vector<1x16x16xf32> to vector<16x16xf32>
    %25 = vector.shape_cast %22 : vector<16x16xf32> to vector<1x16x16xf32>
    tpu.vector_store %arg5[%c0_14, %c0_15, %c0_16], %25 {strides = array<i32>} : memref<1x16x16xf32, #tpu.memory_space<vmem>>, vector<1x16x16xf32>,
    return
  }
  func.func @transform_0(%arg0: i32) -> (i32, i32, i32) {
    %c0_i32 = arith.constant 0 : i32
    %c0_i32_0 = arith.constant 0 : i32
    %c0_i32_1 = arith.constant 0 : i32
    return %arg0, %c0_i32, %c0_i32_0 : i32, i32, i32
  }
  func.func @transform_1(%arg0: i32) -> (i32, i32) {
    %c0_i32 = arith.constant 0 : i32
    %c0_i32_0 = arith.constant 0 : i32
    %c0_i32_1 = arith.constant 0 : i32
    return %c0_i32, %c0_i32_0 : i32, i32
  }
  func.func @transform_2(%arg0: i32) -> (i32, i32) {
    %c0_i32 = arith.constant 0 : i32
    %c0_i32_0 = arith.constant 0 : i32
    %c0_i32_1 = arith.constant 0 : i32
    return %c0_i32, %c0_i32_0 : i32, i32
  }
  func.func @transform_3(%arg0: i32) -> (i32, i32, i32) {
    %c0_i32 = arith.constant 0 : i32
    %c0_i32_0 = arith.constant 0 : i32
    %c0_i32_1 = arith.constant 0 : i32
    return %arg0, %c0_i32, %c0_i32_0 : i32, i32, i32
  }
  func.func @transform_4(%arg0: i32) -> (i32, i32, i32) {
    %c0_i32 = arith.constant 0 : i32
    %c0_i32_0 = arith.constant 0 : i32
    %c0_i32_1 = arith.constant 0 : i32
    return %arg0, %c0_i32, %c0_i32_0 : i32, i32, i32
  }
}

</mosaic_0001>

<llo_original>
// kernel: tpu_custom_call.1
$region0: #{tpu_custom_call.1}
  #allocation0 [shape = 'u32[]', space=smem, size = 0x4, offset = 0x4, fixed_abs, tag = 'smem constant byte address 0x4 - core index']
  #allocation1 [shape = 'u32[144,128]{1,0:T(1,128)}', space=vmem, size = 0x12000, scoped, tag = 'internal scratch']
  %s0 = inlined_call_operand.hbm [shape: f32[2,16,16], index: 0, kind: input, shape index: {}]
  %s1 = inlined_call_operand.hbm [shape: f32[16,16], index: 1, kind: input, shape index: {}]
  %s2 = inlined_call_operand.hbm [shape: f32[16,16], index: 2, kind: input, shape index: {}]
  %s3 = inlined_call_operand.hbm [shape: f32[2,16,16], index: 3, kind: output, shape index: {0}]
  %s4 = inlined_call_operand.hbm [shape: f32[2,16,16], index: 4, kind: output, shape index: {1}]
  %5 = xla_tuple %s3, %s4
  %s6 = sld [smem:[#allocation0]]
  $region65: #{tpu_custom_call.1} parent=0
    _
  %s8 = ssub.s32 1, %s6
  %s9 = scalar_select 0, %s8, %s6
  $region1: #{tpu_custom_call.1} parent=0
    #allocation2 [shape = 'u8[16384]{0}', space=vmem, size = 0x4000, scoped, tag = 'input window, operand 0']
    #allocation3 [shape = 's32[2]{0}', space=sflag, size = 0x8, scoped, tag = 'scoped memory for tpu_custom_call.1']
    #allocation4 [shape = 's32[2]{0}', space=sflag, size = 0x8, scoped, tag = 'scoped memory for tpu_custom_call.1']
    #allocation5 [shape = 'u8[8192]{0}', space=vmem, size = 0x2000, scoped, tag = 'input window, operand 1, single buffered']
    #allocation6 [shape = 's32[1]{0}', space=sflag, size = 0x4, scoped, tag = 'scoped memory for tpu_custom_call.1']
    #allocation7 [shape = 'u8[8192]{0}', space=vmem, size = 0x2000, scoped, tag = 'input window, operand 2, single buffered']
    #allocation8 [shape = 'u8[16384]{0}', space=vmem, size = 0x4000, scoped, tag = 'output window, operand 0']
    #allocation9 [shape = 'u8[16384]{0}', space=vmem, size = 0x4000, scoped, tag = 'output window, operand 1']
    #allocation10 [shape = 's32[2]{0}', space=sflag, size = 0x8, scoped, tag = 'scoped memory for tpu_custom_call.1']
    %10 = vsyncpa [#allocation3], 0
    %s11 = scalar_lea.sflag [#allocation3], 1
    %12 = vsyncpa %s11, 0
    %13 = vsyncpa [#allocation6], 0
    %14 = vsyncpa [#allocation4], 0
    %s15 = scalar_lea.sflag [#allocation4], 1
    %16 = vsyncpa %s15, 0
    %17 = vsyncpa [#allocation10], 0
    %s18 = scalar_lea.sflag [#allocation10], 1
    %19 = vsyncpa %s18, 0
    loop: start=0, step=1, limit=4
    $region2: #{tpu_custom_call.1} parent=1 // loop_pre_header
      _
    $region3: #{tpu_custom_call.1} parent=1 // loop_header
      %s21 = sphi 0, %s25
      %p22 = scmp.ge.s32.totalorder %s21, 4
      %s31 = sphi 0, %s33
      %s34 = sphi 0, %s31
      %s35 = sphi 0, %s34
      %s51 = sphi 0, %s35
      %s55 = sphi 0, %s55
      %s57 = sphi 0, %s55
      %s58 = sphi 0, %s57
      %s72 = sphi 0, %s58
      %s76 = sphi 0, %s76
      %s78 = sphi 0, %s76
      %s79 = sphi 0, %s78
      %s93 = sphi 0, %s79
      %s99 = sphi 0, %s101
      %s102 = sphi 0, %s99
      %s103 = sphi 0, %s102
      %s119 = sphi 0, %s103
      %s125 = sphi 0, %s127
      %s128 = sphi 0, %s125
      %s129 = sphi 0, %s128
      %s145 = sphi 0, %s129
    $region4: #{tpu_custom_call.1} parent=1 // loop_header_branch
      %24 = sbr.rel (%p22) target = $region8
    $region5: #{tpu_custom_call.1} parent=1 // loop_body
      %s26 = ssub.s32 %s21, 1
      %s27 = ssub.s32 %s21, 2
      %s28 = sadd.s32 %s21, 1
      %s29 = ssub.s32 %s21, %s28
      %p30 = scmp.eq.s32.totalorder %s29, 0
      %s32 = sadd.s32 %s31, 1
      %s33 = scalar_select %p30, %s31, %s32
      %p36 = pneg %p30
      %p37 = scmp.eq.s32.totalorder %s21, 1
      %p38 = por %p36, %p37
      %p39 = scmp.ne.s32.totalorder %s31, %s34
      %p40 = scmp.eq.s32.totalorder %s21, 0
      %p41 = por %p39, %p40
      %p42 = scmp.ne.s32.totalorder %s31, %s34
      %p43 = scmp.eq.s32.totalorder %s26, 1
      %p44 = por %p42, %p43
      %p45 = scmp.ne.s32.totalorder %s34, %s35
      %p46 = scmp.eq.s32.totalorder %s26, 0
      %p47 = por %p45, %p46
      %p48 = scmp.ne.s32.totalorder %s34, %s35
      %p49 = scmp.eq.s32.totalorder %s27, 1
      %p50 = por %p48, %p49
      %p52 = scmp.ne.s32.totalorder %s35, %s51
      %p53 = scmp.eq.s32.totalorder %s27, 0
      %p54 = por %p52, %p53
      %s56 = sadd.s32 %s55, 1
      %p59 = scmp.eq.s32.totalorder %s21, 1
      %p60 = scmp.ne.s32.totalorder %s55, %s57
      %p61 = scmp.eq.s32.totalorder %s21, 0
      %p62 = por %p60, %p61
      %p63 = scmp.ne.s32.totalorder %s55, %s57
      %p64 = scmp.eq.s32.totalorder %s26, 1
      %p65 = por %p63, %p64
      %p66 = scmp.ne.s32.totalorder %s57, %s58
      %p67 = scmp.eq.s32.totalorder %s26, 0
      %p68 = por %p66, %p67
      %p69 = scmp.ne.s32.totalorder %s57, %s58
      %p70 = scmp.eq.s32.totalorder %s27, 1
      %p71 = por %p69, %p70
      %p73 = scmp.ne.s32.totalorder %s58, %s72
      %p74 = scmp.eq.s32.totalorder %s27, 0
      %p75 = por %p73, %p74
      %s77 = sadd.s32 %s76, 1
      %p80 = scmp.eq.s32.totalorder %s21, 1
      %p81 = scmp.ne.s32.totalorder %s76, %s78
      %p82 = scmp.eq.s32.totalorder %s21, 0
      %p83 = por %p81, %p82
      %p84 = scmp.ne.s32.totalorder %s76, %s78
      %p85 = scmp.eq.s32.totalorder %s26, 1
      %p86 = por %p84, %p85
      %p87 = scmp.ne.s32.totalorder %s78, %s79
      %p88 = scmp.eq.s32.totalorder %s26, 0
      %p89 = por %p87, %p88
      %p90 = scmp.ne.s32.totalorder %s78, %s79
      %p91 = scmp.eq.s32.totalorder %s27, 1
      %p92 = por %p90, %p91
      %p94 = scmp.ne.s32.totalorder %s79, %s93
      %p95 = scmp.eq.s32.totalorder %s27, 0
      %p96 = por %p94, %p95
      %s97 = ssub.s32 %s21, %s28
      %p98 = scmp.eq.s32.totalorder %s97, 0
      %s100 = sadd.s32 %s99, 1
      %s101 = scalar_select %p98, %s99, %s100
      %p104 = pneg %p98
      %p105 = scmp.eq.s32.totalorder %s21, 1
      %p106 = por %p104, %p105
      %p107 = scmp.ne.s32.totalorder %s99, %s102
      %p108 = scmp.eq.s32.totalorder %s21, 0
      %p109 = por %p107, %p108
      %p110 = scmp.ne.s32.totalorder %s99, %s102
      %p111 = scmp.eq.s32.totalorder %s26, 1
      %p112 = por %p110, %p111
      %p113 = scmp.ne.s32.totalorder %s102, %s103
      %p114 = scmp.eq.s32.totalorder %s26, 0
      %p115 = por %p113, %p114
      %p116 = scmp.ne.s32.totalorder %s102, %s103
      %p117 = scmp.eq.s32.totalorder %s27, 1
      %p118 = por %p116, %p117
      %p120 = scmp.ne.s32.totalorder %s103, %s119
      %p121 = scmp.eq.s32.totalorder %s27, 0
      %p122 = por %p120, %p121
      %s123 = ssub.s32 %s21, %s28
      %p124 = scmp.eq.s32.totalorder %s123, 0
      %s126 = sadd.s32 %s125, 1
      %s127 = scalar_select %p124, %s125, %s126
      %p130 = pneg %p124
      %p131 = scmp.eq.s32.totalorder %s21, 1
      %p132 = por %p130, %p131
      %p133 = scmp.ne.s32.totalorder %s125, %s128
      %p134 = scmp.eq.s32.totalorder %s21, 0
      %p135 = por %p133, %p134
      %p136 = scmp.ne.s32.totalorder %s125, %s128
      %p137 = scmp.eq.s32.totalorder %s26, 1
      %p138 = por %p136, %p137
      %p139 = scmp.ne.s32.totalorder %s128, %s129
      %p140 = scmp.eq.s32.totalorder %s26, 0
      %p141 = por %p139, %p140
      %p142 = scmp.ne.s32.totalorder %s128, %s129
      %p143 = scmp.eq.s32.totalorder %s27, 1
      %p144 = por %p142, %p143
      %p146 = scmp.ne.s32.totalorder %s129, %s145
      %p147 = scmp.eq.s32.totalorder %s27, 0
      %p148 = por %p146, %p147
      %p149 = scmp.le.s32.totalorder 1, %s21
      %p150 = scmp.lt.s32.totalorder %s21, 3
      %p151 = pnand %p149, %p150
      %p152 = pneg %p151
      // Predicated region
      $region9: #{tpu_custom_call.1} parent=5 // pred_check
        _
      $region10: #{tpu_custom_call.1} parent=5 // pred_check_branch
        %154 = sbr.rel (%p151) target = $region12
      $region11: #{tpu_custom_call.1} parent=5 // pred_region
        %s155 = ssub.s32 %s21, 1
        // Predicated region
        $region13: #{tpu_custom_call.1} parent=11 // pred_check
          %p156 = pneg %p68
        $region14: #{tpu_custom_call.1} parent=11 // pred_check_branch
          %158 = sbr.rel (%p156) target = $region16
        $region15: #{tpu_custom_call.1} parent=11 // pred_region
          %s160 = ssub.s32 256, 256
          %161 = vsyncadd [#allocation6], %s160
          %s162 = sshll.u32 [#allocation5], 4
          %s163 = int_to_ptr.vmem [resolvable:$true] %s162
          %168 = dma.hbm_to_vmem [thread:$0]  %s1, 256, %s163, [#allocation6], 128, 128, 8
        $region16: #{tpu_custom_call.1} parent=11 // pred_fallthru
          _
        // Predicated region
        $region17: #{tpu_custom_call.1} parent=11 // pred_check
          %p169 = pneg %p89
        $region18: #{tpu_custom_call.1} parent=11 // pred_check_branch
          %171 = sbr.rel (%p169) target = $region20
        $region19: #{tpu_custom_call.1} parent=11 // pred_region
          %s173 = ssub.s32 256, 256
          %174 = vsyncadd [#allocation6], %s173
          %s175 = sshll.u32 [#allocation7], 4
          %s176 = int_to_ptr.vmem [resolvable:$true] %s175
          %181 = dma.hbm_to_vmem [thread:$0]  %s2, 256, %s176, [#allocation6], 128, 128, 8
        $region20: #{tpu_custom_call.1} parent=11 // pred_fallthru
          _
      $region12: #{tpu_custom_call.1} parent=5 // pred_fallthru
        _
      %p182 = scmp.lt.s32.totalorder %s21, 2
      // Predicated region
      $region21: #{tpu_custom_call.1} parent=5 // pred_check
        %p183 = pneg %p182
      $region22: #{tpu_custom_call.1} parent=5 // pred_check_branch
        %185 = sbr.rel (%p183) target = $region24
      $region23: #{tpu_custom_call.1} parent=5 // pred_region
        // Predicated region
        $region25: #{tpu_custom_call.1} parent=23 // pred_check
          %p186 = pneg %p41
        $region26: #{tpu_custom_call.1} parent=23 // pred_check_branch
          %188 = sbr.rel (%p186) target = $region28
        $region27: #{tpu_custom_call.1} parent=23 // pred_region
          %s189 = sand.u32 %s31, 1
          %s190 = scalar_lea.sflag [#allocation3], %s189
          %s191 = sand.u32 %s31, 1
          %s192 = smul.addr %s191, 16
          %s193 = scalar_lea.vmem [#allocation2], %s192
          %s195 = ssub.s32 256, 256
          %196 = vsyncadd %s190, %s195
          %s197 = smul.addr %s21, 2
          %s198 = smul.addr %s197, 128
          %s199 = scalar_lea.hbm %s0, %s198
          %s200 = sshll.u32 %s193, 4
          %s201 = int_to_ptr.vmem [resolvable:$true] %s200
          %206 = dma.hbm_to_vmem [thread:$0]  %s199, 256, %s201, %s190, 128, 128, 8
        $region28: #{tpu_custom_call.1} parent=23 // pred_fallthru
          _
      $region24: #{tpu_custom_call.1} parent=5 // pred_fallthru
        _
      %p207 = scmp.le.s32.totalorder 1, %s21
      %p208 = scmp.lt.s32.totalorder %s21, 3
      %p209 = pnand %p207, %p208
      %p210 = pneg %p209
      // Predicated region
      $region29: #{tpu_custom_call.1} parent=5 // pred_check
        _
      $region30: #{tpu_custom_call.1} parent=5 // pred_check_branch
        %212 = sbr.rel (%p209) target = $region32
      $region31: #{tpu_custom_call.1} parent=5 // pred_region
        %s213 = ssub.s32 %s21, 1
        %s214 = sand.u32 %s34, 1
        %s215 = scalar_lea.sflag [#allocation3], %s214
        %s216 = sand.u32 %s34, 1
        %s217 = smul.addr %s216, 16
        %s218 = scalar_lea.vmem [#allocation2], %s217
        // Predicated region
        $region33: #{tpu_custom_call.1} parent=31 // pred_check
          %p219 = pneg %p47
        $region34: #{tpu_custom_call.1} parent=31 // pred_check_branch
          %221 = sbr.rel (%p219) target = $region36
        $region35: #{tpu_custom_call.1} parent=31 // pred_region
          %222 = dma.done %s215, 256
        $region36: #{tpu_custom_call.1} parent=31 // pred_fallthru
          _
        // Predicated region
        $region37: #{tpu_custom_call.1} parent=31 // pred_check
          %p223 = pneg %p68
        $region38: #{tpu_custom_call.1} parent=31 // pred_check_branch
          %225 = sbr.rel (%p223) target = $region40
        $region39: #{tpu_custom_call.1} parent=31 // pred_region
          %226 = dma.done [#allocation6], 256
        $region40: #{tpu_custom_call.1} parent=31 // pred_fallthru
          _
        // Predicated region
        $region41: #{tpu_custom_call.1} parent=31 // pred_check
          %p227 = pneg %p89
        $region42: #{tpu_custom_call.1} parent=31 // pred_check_branch
          %229 = sbr.rel (%p227) target = $region44
        $region43: #{tpu_custom_call.1} parent=31 // pred_region
          %230 = dma.done [#allocation6], 256
        $region44: #{tpu_custom_call.1} parent=31 // pred_fallthru
          _
        %s231 = sand.u32 %s34, 1
        %s232 = scalar_lea.sflag [#allocation3], %s231
        %s233 = sand.u32 %s34, 1
        %s234 = smul.addr %s233, 16
        %s235 = scalar_lea.vmem [#allocation2], %s234
        %p236 = pneg %p47
        %p237 = pneg %p44
        %p238 = pneg %p68
        %p239 = pneg %p65
        %p240 = pneg %p89
        %p241 = pneg %p86
        %p242 = pneg %p115
        %p243 = pneg %p112
        %s244 = sand.u32 %s102, 1
        %s245 = scalar_lea.sflag [#allocation4], %s244
        %s246 = sand.u32 %s102, 1
        %s247 = smul.addr %s246, 16
        %s248 = scalar_lea.vmem [#allocation8], %s247
        %p249 = pneg %p141
        %p250 = pneg %p138
        %s251 = sand.u32 %s128, 1
        %s252 = scalar_lea.sflag [#allocation10], %s251
        %s253 = sand.u32 %s128, 1
        %s254 = smul.addr %s253, 16
        %s255 = scalar_lea.vmem [#allocation9], %s254
        %v256 = vld [vmem:[%s218] sm:$0xff]
        %v257 = vld [vmem:[%s218 + $0x8] sm:$0xff]
        %v258 = vld [vmem:[#allocation5] sm:$0xff]
        %v259 = vld [vmem:[#allocation5 + $0x8] sm:$0xff]
        %vm260 = vcmask 130048
        %v262 = vsel %vm260, %v258, 0
        %v265 = vsel %vm260, %v259, 0
        %267 = vmatprep.subr.mxu0 0.0
        %268 = vmatpush1.msra.mxu0 %v256
        %269 = vmatprep.subr.mxu0 0.0
        %270 = vmatpush1.msra.mxu0 %v257
        %271 = vmatprep.subr.mxu0 0.0
        %272 = vmatpush1.msra.mxu0 0.0
        %273 = vmatprep.subr.mxu0 0.0
        %274 = vmatpush1.msra.mxu0 0.0
        %275 = vmatprep.subr.mxu0 0.0
        %276 = vmatpush1.msra.mxu0 0.0
        %277 = vmatprep.subr.mxu0 0.0
        %278 = vmatpush1.msra.mxu0 0.0
        %279 = vmatprep.subr.mxu0 0.0
        %280 = vmatpush1.msra.mxu0 0.0
        %281 = vmatprep.subr.mxu0 0.0
        %282 = vmatpush1.msra.mxu0 0.0
        %283 = vmatprep.subr.mxu0 0.0
        %284 = vmatpush1.msra.mxu0 0.0
        %285 = vmatprep.subr.mxu0 0.0
        %286 = vmatpush1.msra.mxu0 0.0
        %287 = vmatprep.subr.mxu0 0.0
        %288 = vmatpush1.msra.mxu0 0.0
        %289 = vmatprep.subr.mxu0 0.0
        %290 = vmatpush1.msra.mxu0 0.0
        %291 = vmatprep.subr.mxu0 0.0
        %292 = vmatpush1.msra.mxu0 0.0
        %293 = vmatprep.subr.mxu0 0.0
        %294 = vmatpush1.msra.mxu0 0.0
        %295 = vmatprep.subr.mxu0 0.0
        %296 = vmatpush1.msra.mxu0 0.0
        %297 = vmatprep.subr.mxu0 0.0
        %298 = vmatpush1.msra.mxu0 0.0
        %299 = vmatprep.subr.mxu0 0.0
        %300 = vmatpush1.msra.mxu0 0.0
        %301 = vmatprep.subr.mxu0 0.0
        %302 = vmatpush1.msra.mxu0 0.0
        %303 = vmatprep.subr.mxu0 0.0
        %304 = vmatpush1.msra.mxu0 0.0
        %305 = vmatprep.subr.mxu0 0.0
        %306 = vmatpush1.msra.mxu0 0.0
        %307 = vmatprep.subr.mxu0 0.0
        %308 = vmatpush1.msra.mxu0 0.0
        %309 = vmatprep.subr.mxu0 0.0
        %310 = vmatpush1.msra.mxu0 0.0
        %311 = vmatprep.subr.mxu0 0.0
        %312 = vmatpush1.msra.mxu0 0.0
        %313 = vmatprep.subr.mxu0 0.0
        %314 = vmatpush1.msra.mxu0 0.0
        %315 = vmatprep.subr.mxu0 0.0
        %316 = vmatpush1.msra.mxu0 0.0
        %317 = vmatprep.subr.mxu0 0.0
        %318 = vmatpush1.msra.mxu0 0.0
        %319 = vmatprep.subr.mxu0 0.0
        %320 = vmatpush1.msra.mxu0 0.0
        %321 = vmatprep.subr.mxu0 0.0
        %322 = vmatpush1.msra.mxu0 0.0
        %323 = vmatprep.subr.mxu0 0.0
        %324 = vmatpush1.msra.mxu0 0.0
        %325 = vmatprep.subr.mxu0 0.0
        %326 = vmatpush1.msra.mxu0 0.0
        %327 = vmatprep.subr.mxu0 0.0
        %328 = vmatpush1.msra.mxu0 0.0
        %329 = vmatprep.subr.mxu0 0.0
        %330 = vmatpush1.msra.mxu0 0.0
        %331 = vmatprep.mubr.f32.mxu0 0.0
        %332 = vmatmul.mubr.f32.gmra.mrb[0].mxu0 %v262
        %v333 = vpop.f32.mrb[0].mxu0
        %v334 = vadd.f32 0.0, %v333
        %v335 = vpop.f32.mrb[0].mxu0
        %336 = vmatprep.mubr.f32.mxu0 0.0
        %337 = vmatmul.mubr.f32.gmra.mrb[0].mxu0 %v265
        %v338 = vpop.f32.mrb[0].mxu0
        %v339 = vadd.f32 0.0, %v338
        %v340 = vpop.f32.mrb[0].mxu0
        %341 = vdwg.mxu0
        %v342 = vld [vmem:[#allocation7] sm:$0xff]
        %v343 = vld [vmem:[#allocation7 + $0x8] sm:$0xff]
        %v345 = vsel %vm260, %v256, 0
        %v348 = vsel %vm260, %v257, 0
        %350 = vmatprep.subr.mxu0 0.0
        %351 = vmatpush1.msra.mxu0 %v342
        %352 = vmatprep.subr.mxu0 0.0
        %353 = vmatpush1.msra.mxu0 %v343
        %354 = vmatprep.subr.mxu0 0.0
        %355 = vmatpush1.msra.mxu0 0.0
        %356 = vmatprep.subr.mxu0 0.0
        %357 = vmatpush1.msra.mxu0 0.0
        %358 = vmatprep.subr.mxu0 0.0
        %359 = vmatpush1.msra.mxu0 0.0
        %360 = vmatprep.subr.mxu0 0.0
        %361 = vmatpush1.msra.mxu0 0.0
        %362 = vmatprep.subr.mxu0 0.0
        %363 = vmatpush1.msra.mxu0 0.0
        %364 = vmatprep.subr.mxu0 0.0
        %365 = vmatpush1.msra.mxu0 0.0
        %366 = vmatprep.subr.mxu0 0.0
        %367 = vmatpush1.msra.mxu0 0.0
        %368 = vmatprep.subr.mxu0 0.0
        %369 = vmatpush1.msra.mxu0 0.0
        %370 = vmatprep.subr.mxu0 0.0
        %371 = vmatpush1.msra.mxu0 0.0
        %372 = vmatprep.subr.mxu0 0.0
        %373 = vmatpush1.msra.mxu0 0.0
        %374 = vmatprep.subr.mxu0 0.0
        %375 = vmatpush1.msra.mxu0 0.0
        %376 = vmatprep.subr.mxu0 0.0
        %377 = vmatpush1.msra.mxu0 0.0
        %378 = vmatprep.subr.mxu0 0.0
        %379 = vmatpush1.msra.mxu0 0.0
        %380 = vmatprep.subr.mxu0 0.0
        %381 = vmatpush1.msra.mxu0 0.0
        %382 = vmatprep.subr.mxu0 0.0
        %383 = vmatpush1.msra.mxu0 0.0
        %384 = vmatprep.subr.mxu0 0.0
        %385 = vmatpush1.msra.mxu0 0.0
        %386 = vmatprep.subr.mxu0 0.0
        %387 = vmatpush1.msra.mxu0 0.0
        %388 = vmatprep.subr.mxu0 0.0
        %389 = vmatpush1.msra.mxu0 0.0
        %390 = vmatprep.subr.mxu0 0.0
        %391 = vmatpush1.msra.mxu0 0.0
        %392 = vmatprep.subr.mxu0 0.0
        %393 = vmatpush1.msra.mxu0 0.0
        %394 = vmatprep.subr.mxu0 0.0
        %395 = vmatpush1.msra.mxu0 0.0
        %396 = vmatprep.subr.mxu0 0.0
        %397 = vmatpush1.msra.mxu0 0.0
        %398 = vmatprep.subr.mxu0 0.0
        %399 = vmatpush1.msra.mxu0 0.0
        %400 = vmatprep.subr.mxu0 0.0
        %401 = vmatpush1.msra.mxu0 0.0
        %402 = vmatprep.subr.mxu0 0.0
        %403 = vmatpush1.msra.mxu0 0.0
        %404 = vmatprep.subr.mxu0 0.0
        %405 = vmatpush1.msra.mxu0 0.0
        %406 = vmatprep.subr.mxu0 0.0
        %407 = vmatpush1.msra.mxu0 0.0
        %408 = vmatprep.subr.mxu0 0.0
        %409 = vmatpush1.msra.mxu0 0.0
        %410 = vmatprep.subr.mxu0 0.0
        %411 = vmatpush1.msra.mxu0 0.0
        %412 = vmatprep.subr.mxu0 0.0
        %413 = vmatpush1.msra.mxu0 0.0
        %414 = vmatprep.mubr.f32.mxu0 0.0
        %415 = vmatmul.mubr.f32.gmra.mrb[0].mxu0 %v345
        %v416 = vpop.f32.mrb[0].mxu0
        %v417 = vadd.f32 0.0, %v416
        %v418 = vpop.f32.mrb[0].mxu0
        %419 = vmatprep.mubr.f32.mxu0 0.0
        %420 = vmatmul.mubr.f32.gmra.mrb[0].mxu0 %v348
        %v421 = vpop.f32.mrb[0].mxu0
        %v422 = vadd.f32 0.0, %v421
        %v423 = vpop.f32.mrb[0].mxu0
        %424 = vdwg.mxu0
        %v425 = vadd.f32 %v339, 1e-06
        %v426 = vlaneseq
        %v427 = vshrl.u32 %v426, 7
        %v428 = vsub.s32 7, %v427
        %v429 = vrot.slane %v425, %v428
        %v430 = vrcp.pop %v429
        %v431 = vmul.f32 %v334, %v430
        %v432 = vmul.f32 %v339, %v430
        %v433 = vmul.f32 %v431, 6.2831855
        %v434 = vmul.f32 %v432, 6.2831855
        %435 = vst.msk [vmem:[%s248] sm:$0xff] %vm260, %v433
        %436 = vst.msk [vmem:[%s248 + $0x8] sm:$0xff] %vm260, %v434
        %v437 = vadd.f32 %v417, 1e-06
        %v438 = vadd.f32 %v422, 1e-06
        %440 = vset.pattern.permute.xlu0 15
        %441 = vperm.xlu0 %440, %v437
        %v442 = vpop.permute.xlu0 %441
        %445 = vset.pattern.permute.xlu0 15
        %446 = vperm.xlu0 %445, %v438
        %v447 = vpop.permute.xlu0 %446
        %v449 = vrcp.pop %v442
        %v450 = vmul.f32 %v417, %v449
        %v451 = vrcp.pop %v447
        %v452 = vmul.f32 %v422, %v451
        %v453 = vmul.f32 %v450, 6.2831855
        %v454 = vmul.f32 %v452, 6.2831855
        %455 = vst.msk [vmem:[%s255] sm:$0xff] %vm260, %v453
        %456 = vst.msk [vmem:[%s255 + $0x8] sm:$0xff] %vm260, %v454
        %s457 = sand.u32 %s102, 1
        %s458 = scalar_lea.sflag [#allocation4], %s457
        %s459 = sand.u32 %s102, 1
        %s460 = smul.addr %s459, 16
        %s461 = scalar_lea.vmem [#allocation8], %s460
        %s462 = sand.u32 %s128, 1
        %s463 = scalar_lea.sflag [#allocation10], %s462
        %s464 = sand.u32 %s128, 1
        %s465 = smul.addr %s464, 16
        %s466 = scalar_lea.vmem [#allocation9], %s465
        // Predicated region
        $region45: #{tpu_custom_call.1} parent=31 // pred_check
          %p467 = pneg %p112
        $region46: #{tpu_custom_call.1} parent=31 // pred_check_branch
          %469 = sbr.rel (%p467) target = $region48
        $region47: #{tpu_custom_call.1} parent=31 // pred_region
          %s471 = ssub.s32 256, 256
          %472 = vsyncadd %s458, %s471
          %s473 = smul.addr %s26, 2
          %s474 = smul.addr %s473, 128
          %s475 = scalar_lea.hbm %s3, %s474
          %s476 = sshll.u32 %s461, 4
          %s477 = int_to_ptr.vmem [resolvable:$true] %s476
          %482 = dma.vmem_to_hbm [thread:$0]  %s477, 256, %s475, %s458, 128, 128, 8
        $region48: #{tpu_custom_call.1} parent=31 // pred_fallthru
          _
        // Predicated region
        $region49: #{tpu_custom_call.1} parent=31 // pred_check
          %p483 = pneg %p138
        $region50: #{tpu_custom_call.1} parent=31 // pred_check_branch
          %485 = sbr.rel (%p483) target = $region52
        $region51: #{tpu_custom_call.1} parent=31 // pred_region
          %s487 = ssub.s32 256, 256
          %488 = vsyncadd %s463, %s487
          %s489 = smul.addr %s26, 2
          %s490 = smul.addr %s489, 128
          %s491 = scalar_lea.hbm %s4, %s490
          %s492 = sshll.u32 %s466, 4
          %s493 = int_to_ptr.vmem [resolvable:$true] %s492
          %498 = dma.vmem_to_hbm [thread:$0]  %s493, 256, %s491, %s463, 128, 128, 8
        $region52: #{tpu_custom_call.1} parent=31 // pred_fallthru
          _
      $region32: #{tpu_custom_call.1} parent=5 // pred_fallthru
        _
      %p499 = scmp.le.s32.totalorder 2, %s21
      // Predicated region
      $region53: #{tpu_custom_call.1} parent=5 // pred_check
        %p500 = pneg %p499
      $region54: #{tpu_custom_call.1} parent=5 // pred_check_branch
        %502 = sbr.rel (%p500) target = $region56
      $region55: #{tpu_custom_call.1} parent=5 // pred_region
        %s503 = ssub.s32 %s21, 2
        // Predicated region
        $region57: #{tpu_custom_call.1} parent=55 // pred_check
          %p504 = pneg %p118
        $region58: #{tpu_custom_call.1} parent=55 // pred_check_branch
          %506 = sbr.rel (%p504) target = $region60
        $region59: #{tpu_custom_call.1} parent=55 // pred_region
          %s507 = sand.u32 %s103, 1
          %s508 = scalar_lea.sflag [#allocation4], %s507
          %s509 = sand.u32 %s103, 1
          %s510 = smul.addr %s509, 16
          %s511 = scalar_lea.vmem [#allocation8], %s510
          %512 = dma.done %s508, 256
        $region60: #{tpu_custom_call.1} parent=55 // pred_fallthru
          _
        // Predicated region
        $region61: #{tpu_custom_call.1} parent=55 // pred_check
          %p513 = pneg %p144
        $region62: #{tpu_custom_call.1} parent=55 // pred_check_branch
          %515 = sbr.rel (%p513) target = $region64
        $region63: #{tpu_custom_call.1} parent=55 // pred_region
          %s516 = sand.u32 %s129, 1
          %s517 = scalar_lea.sflag [#allocation10], %s516
          %s518 = sand.u32 %s129, 1
          %s519 = smul.addr %s518, 16
          %s520 = scalar_lea.vmem [#allocation9], %s519
          %521 = dma.done %s517, 256
        $region64: #{tpu_custom_call.1} parent=55 // pred_fallthru
          _
      $region56: #{tpu_custom_call.1} parent=5 // pred_fallthru
        _
    $region6: #{tpu_custom_call.1} parent=1 // loop_footer
      %s25 = sadd.s32 1, %s21
    $region7: #{tpu_custom_call.1} parent=1 // loop_footer_branch
      %20 = sbr.rel target = $region3
    $region8: #{tpu_custom_call.1} parent=1 // loop_exit
      _
    %522 = vsyncpa [#allocation3], 1
    %s523 = scalar_lea.sflag [#allocation3], 1
    %524 = vsyncpa %s523, 1
    %525 = vsyncpa [#allocation6], 1
    %526 = vsyncpa [#allocation4], 1
    %s527 = scalar_lea.sflag [#allocation4], 1
    %528 = vsyncpa %s527, 1
    %529 = vsyncpa [#allocation10], 1
    %s530 = scalar_lea.sflag [#allocation10], 1
    %531 = vsyncpa %s530, 1

</llo_original>
